<compile_context>
chip_gen: v5e
topology: v5e:2x2
jax: 0.10.0
libtpu: 0.0.40
codegen_flags: <defaults>
</compile_context>

<pallas_src>
import functools

import jax
import jax.numpy as jnp
from jax.experimental import pallas as pl
from jax.experimental.pallas import tpu as pltpu


def _conv_relu_kernel(x_ref, w_ref, b_ref, o_ref, *, apply_relu,
                      negative_slope, mxu_dtype):
    # x_ref: (1, 9*Cin, M)  im2col operand for one image, M = Ho*Wo (lane-dense)
    # w_ref: (Cout, 9*Cin)  resident weight, K ordered as (dy, dx, ci)
    # b_ref: (Cout, 1)      bias, broadcasts along lanes
    # o_ref: (1, Cout, M)   NCHW-order output (lane-dense last dim)
    lhs = w_ref[...]
    rhs = x_ref[0]
    if mxu_dtype is not None:
        lhs = lhs.astype(mxu_dtype)
        rhs = rhs.astype(mxu_dtype)

    # Single MXU matmul, result already in (Cout, M) orientation, f32 acc.
    acc = jnp.dot(lhs, rhs, preferred_element_type=jnp.float32)   # (Cout, M)

    # Lane-dense epilogue: bias + LeakyReLU + cast on (Cout, M) = 2 vregs.
    acc = acc + b_ref[...]
    if apply_relu:
        acc = jnp.where(acc >= 0, acc, negative_slope * acc)
    o_ref[0] = acc.astype(o_ref.dtype)


def conv_relu(x_nchw, weight_oihw, bias, *, stride=1, init_zero=False,
              negative_slope=0.01, mxu_dtype=None):
    """ConvRelu forward. x_nchw: (N, Cin, H, W); weight: (Cout, Cin, 3, 3)."""
    N, Cin, H, W = x_nchw.shape
    Cout = weight_oihw.shape[0]
    Ho = (H + 2 - 3) // stride + 1
    Wo = (W + 2 - 3) // stride + 1
    M = Ho * Wo
    K = 9 * Cin

    # --- Fused XLA prep: pad + im2col with K on sublanes, Ho*Wo on lanes. ---
    # Stride decimation happens here (wrapper side), never inside the kernel.
    xp = jnp.pad(x_nchw, ((0, 0), (0, 0), (1, 1), (1, 1)))   # (N, Cin, Hp, Wp)
    taps = []
    for dy in range(3):
        for dx in range(3):
            taps.append(xp[:, :,
                           dy:dy + stride * (Ho - 1) + 1:stride,
                           dx:dx + stride * (Wo - 1) + 1:stride])  # (N,Cin,Ho,Wo)
    im2col = jnp.stack(taps, axis=1).reshape(N, K, M)   # K = (dy*3+dx)*Cin + ci

    # One-time weight/bias layout matching that K order; bias on sublanes.
    w = jnp.transpose(weight_oihw, (0, 2, 3, 1)).reshape(Cout, K)
    b = bias.reshape(Cout, 1)

    kernel = functools.partial(
        _conv_relu_kernel,
        apply_relu=not init_zero,   # init_zero=True -> conv only (no LeakyReLU)
        negative_slope=negative_slope,
        mxu_dtype=mxu_dtype,
    )

    out = pl.pallas_call(
        kernel,
        out_shape=jax.ShapeDtypeStruct((N, Cout, M), x_nchw.dtype),
        grid=(N,),
        in_specs=[
            pl.BlockSpec((1, K, M), lambda n: (n, 0, 0)),
            pl.BlockSpec((Cout, K), lambda n: (0, 0)),   # VMEM-resident weight
            pl.BlockSpec((Cout, 1), lambda n: (0, 0)),   # VMEM-resident bias
        ],
        out_specs=pl.BlockSpec((1, Cout, M), lambda n: (n, 0, 0)),
        compiler_params=pltpu.CompilerParams(
            dimension_semantics=("parallel",)),
    )(im2col, w, b)

    # Contiguous reshape only (no HBM transpose): already NCHW order.
    return out.reshape(N, Cout, Ho, Wo)


def _reference(x_nchw, weight_oihw, bias, *, stride=1, init_zero=False,
               negative_slope=0.01):
    out = jax.lax.conv_general_dilated(
        x_nchw, weight_oihw,
        window_strides=(stride, stride),
        padding=((1, 1), (1, 1)),
        dimension_numbers=("NCHW", "OIHW", "NCHW"),
    )
    out = out + bias.reshape(1, -1, 1, 1)
    if not init_zero:
        out = jnp.where(out >= 0, out, negative_slope * out)
    return out


if __name__ == "__main__":
    # Module config: ConvRelu(channels_in=4, channels_out=8, stride=1)
    N, Cin, H, W = 2, 4, 16, 16
    Cout = 8

    key = jax.random.PRNGKey(0)
    kx, kw, kb = jax.random.split(key, 3)

    x = jax.random.normal(kx, (N, Cin, H, W), dtype=jnp.float32)
    # Deterministic init (stand-in for PyTorch's default Conv2d init).
    fan_in = Cin * 3 * 3
    bound = 1.0 / jnp.sqrt(fan_in)
    weight = jax.random.uniform(kw, (Cout, Cin, 3, 3), dtype=jnp.float32,
                                minval=-bound, maxval=bound)
    bias = jax.random.uniform(kb, (Cout,), dtype=jnp.float32,
                              minval=-bound, maxval=bound)

    # Main check: stride=1 with LeakyReLU (module default path).
    out = conv_relu(x, weight, bias, stride=1, init_zero=False)
    out = jax.block_until_ready(out)
    ref = _reference(x, weight, bias, stride=1, init_zero=False)
    assert out.shape == (N, Cout, H, W)
    assert jnp.allclose(out, ref, atol=1e-4, rtol=1e-4), "mismatch (stride=1)"

    # Secondary checks: stride=2 path and init_zero=True (conv only).
    out2 = jax.block_until_ready(conv_relu(x, weight, bias, stride=2))
    ref2 = _reference(x, weight, bias, stride=2)
    assert out2.shape == ref2.shape
    assert jnp.allclose(out2, ref2, atol=1e-4, rtol=1e-4), "mismatch (stride=2)"

    out3 = jax.block_until_ready(
        conv_relu(x, weight, bias, stride=1, init_zero=True))
    ref3 = _reference(x, weight, bias, stride=1, init_zero=True)
    assert jnp.allclose(out3, ref3, atol=1e-4, rtol=1e-4), "mismatch (init_zero)"

    print("KERNEL_OK")
</pallas_src>

<mosaic_0001>
module attributes {stable_mosaic.version = 11 : i64} {
  func.func @_conv_relu_kernel(%arg0: i32, %arg1: memref<1x36x256xf32, #tpu.memory_space<vmem>>, %arg2: memref<8x36xf32, #tpu.memory_space<vmem>>, %arg3: memref<8x1xf32, #tpu.memory_space<vmem>>, %arg4: memref<1x8x256xf32, #tpu.memory_space<vmem>>) attributes {dimension_semantics = [#tpu.dimension_semantics<parallel>], iteration_bounds = array<i64: 2>, scalar_prefetch = 0 : i64, scratch_operands = 0 : i64, tpu.core_type = #tpu.core_type<tc>, window_params = [{transform_indices = @transform_0, window_bounds = array<i64: 1, 36, 256>}, {pipeline_mode = #tpu.pipeline_mode<synchronous>, transform_indices = @transform_1, window_bounds = array<i64: 8, 36>}, {pipeline_mode = #tpu.pipeline_mode<synchronous>, transform_indices = @transform_2, window_bounds = array<i64: 8, 1>}, {transform_indices = @transform_3, window_bounds = array<i64: 1, 8, 256>}]} {
    %c0 = arith.constant 0 : index
    %c0_0 = arith.constant 0 : index
    %0 = vector.load %arg2[%c0, %c0_0] : memref<8x36xf32, #tpu.memory_space<vmem>>, vector<8x36xf32>
    %c0_1 = arith.constant 0 : index
    %c0_2 = arith.constant 0 : index
    %c0_3 = arith.constant 0 : index
    %1 = vector.load %arg1[%c0_1, %c0_2, %c0_3] : memref<1x36x256xf32, #tpu.memory_space<vmem>>, vector<1x36x256xf32>
    %2 = vector.shape_cast %1 : vector<1x36x256xf32> to vector<36x256xf32>
    %cst = arith.constant dense<0.000000e+00> : vector<8x256xf32>
    %3 = tpu.matmul %0, %2, %cst {dimension_numbers = #tpu.dot_dimension_numbers<[1], [0], [0], [1], [0, 0, 1, 1], [], []>} : vector<8x36xf32>, vector<36x256xf32>, vector<8x256xf32> -> vector<8x256xf32>
    %c0_4 = arith.constant 0 : index
    %c0_5 = arith.constant 0 : index
    %4 = vector.load %arg3[%c0_4, %c0_5] : memref<8x1xf32, #tpu.memory_space<vmem>>, vector<8x1xf32>
    %5 = vector.broadcast %4 : vector<8x1xf32> to vector<8x256xf32>
    %6 = arith.addf %3, %5 : vector<8x256xf32>
    %cst_6 = arith.constant 0.000000e+00 : f32
    %7 = vector.broadcast %cst_6 : f32 to vector<8x256xf32>
    %8 = arith.cmpf oge, %6, %7 : vector<8x256xf32>
    %cst_7 = arith.constant 0.00999999977 : f32
    %9 = vector.broadcast %cst_7 : f32 to vector<8x256xf32>
    %10 = arith.mulf %9, %6 : vector<8x256xf32>
    %11 = arith.select %8, %6, %10 : vector<8x256xi1>, vector<8x256xf32>
    %c0_8 = arith.constant 0 : index
    %c0_9 = arith.constant 0 : index
    %c0_10 = arith.constant 0 : index
    %12 = vector.load %arg4[%c0_8, %c0_9, %c0_10] : memref<1x8x256xf32, #tpu.memory_space<vmem>>, vector<1x8x256xf32>
    %13 = vector.shape_cast %12 : vector<1x8x256xf32> to vector<8x256xf32>
    %14 = vector.shape_cast %11 : vector<8x256xf32> to vector<1x8x256xf32>
    tpu.vector_store %arg4[%c0_8, %c0_9, %c0_10], %14 {strides = array<i32>} : memref<1x8x256xf32, #tpu.memory_space<vmem>>, vector<1x8x256xf32>,
    return
  }
  func.func @transform_0(%arg0: i32) -> (i32, i32, i32) {
    %c0_i32 = arith.constant 0 : i32
    %c0_i32_0 = arith.constant 0 : i32
    %c0_i32_1 = arith.constant 0 : i32
    return %arg0, %c0_i32, %c0_i32_0 : i32, i32, i32
  }
  func.func @transform_1(%arg0: i32) -> (i32, i32) {
    %c0_i32 = arith.constant 0 : i32
    %c0_i32_0 = arith.constant 0 : i32
    %c0_i32_1 = arith.constant 0 : i32
    return %c0_i32, %c0_i32_0 : i32, i32
  }
  func.func @transform_2(%arg0: i32) -> (i32, i32) {
    %c0_i32 = arith.constant 0 : i32
    %c0_i32_0 = arith.constant 0 : i32
    %c0_i32_1 = arith.constant 0 : i32
    return %c0_i32, %c0_i32_0 : i32, i32
  }
  func.func @transform_3(%arg0: i32) -> (i32, i32, i32) {
    %c0_i32 = arith.constant 0 : i32
    %c0_i32_0 = arith.constant 0 : i32
    %c0_i32_1 = arith.constant 0 : i32
    return %arg0, %c0_i32, %c0_i32_0 : i32, i32, i32
  }
}

</mosaic_0001>

<llo_original>
// kernel: tpu_custom_call.1
$region0: #{tpu_custom_call.1}
  #allocation0 [shape = 'u32[]', space=smem, size = 0x4, offset = 0x4, fixed_abs, tag = 'smem constant byte address 0x4 - core index']
  #allocation1 [shape = 'u32[72,128]{1,0:T(1,128)}', space=vmem, size = 0x9000, scoped, tag = 'internal scratch']
  %s0 = inlined_call_operand.vmem [shape: f32[2,36,256], index: 0, kind: input, shape index: {}]
  %s1 = inlined_call_operand.vmem [shape: f32[8,36], index: 1, kind: input, shape index: {}]
  %s2 = inlined_call_operand.vmem [shape: f32[8,1], index: 2, kind: input, shape index: {}]
  %s3 = inlined_call_operand.hbm [shape: f32[2,8,256], index: 3, kind: output, shape index: {}]
  %s4 = sld [smem:[#allocation0]]
  $region45: #{tpu_custom_call.1} parent=0
    _
  %s6 = ssub.s32 1, %s4
  %s7 = scalar_select 0, %s6, %s4
  $region1: #{tpu_custom_call.1} parent=0
    #allocation2 [shape = 'u8[16384]{0}', space=vmem, size = 0x4000, scoped, tag = 'output window, operand 0']
    #allocation3 [shape = 's32[2]{0}', space=sflag, size = 0x8, scoped, tag = 'scoped memory for tpu_custom_call.1']
    %8 = vsyncpa [#allocation3], 0
    %s9 = scalar_lea.sflag [#allocation3], 1
    %10 = vsyncpa %s9, 0
    loop: start=0, step=1, limit=4
    $region2: #{tpu_custom_call.1} parent=1 // loop_pre_header
      _
    $region3: #{tpu_custom_call.1} parent=1 // loop_header
      %s12 = sphi 0, %s16
      %p13 = scmp.ge.s32.totalorder %s12, 4
      %s22 = sphi 0, %s24
      %s25 = sphi 0, %s22
      %s26 = sphi 0, %s25
      %s42 = sphi 0, %s26
      %s46 = sphi 0, %s46
      %s48 = sphi 0, %s46
      %s49 = sphi 0, %s48
      %s63 = sphi 0, %s49
      %s67 = sphi 0, %s67
      %s69 = sphi 0, %s67
      %s70 = sphi 0, %s69
      %s84 = sphi 0, %s70
      %s90 = sphi 0, %s92
      %s93 = sphi 0, %s90
      %s94 = sphi 0, %s93
      %s110 = sphi 0, %s94
    $region4: #{tpu_custom_call.1} parent=1 // loop_header_branch
      %15 = sbr.rel (%p13) target = $region8
    $region5: #{tpu_custom_call.1} parent=1 // loop_body
      %s17 = ssub.s32 %s12, 1
      %s18 = ssub.s32 %s12, 2
      %s19 = sadd.s32 %s12, 1
      %s20 = ssub.s32 %s12, %s19
      %p21 = scmp.eq.s32.totalorder %s20, 0
      %s23 = sadd.s32 %s22, 1
      %s24 = scalar_select %p21, %s22, %s23
      %p27 = pneg %p21
      %p28 = scmp.eq.s32.totalorder %s12, 1
      %p29 = por %p27, %p28
      %p30 = scmp.ne.s32.totalorder %s22, %s25
      %p31 = scmp.eq.s32.totalorder %s12, 0
      %p32 = por %p30, %p31
      %p33 = scmp.ne.s32.totalorder %s22, %s25
      %p34 = scmp.eq.s32.totalorder %s17, 1
      %p35 = por %p33, %p34
      %p36 = scmp.ne.s32.totalorder %s25, %s26
      %p37 = scmp.eq.s32.totalorder %s17, 0
      %p38 = por %p36, %p37
      %p39 = scmp.ne.s32.totalorder %s25, %s26
      %p40 = scmp.eq.s32.totalorder %s18, 1
      %p41 = por %p39, %p40
      %p43 = scmp.ne.s32.totalorder %s26, %s42
      %p44 = scmp.eq.s32.totalorder %s18, 0
      %p45 = por %p43, %p44
      %s47 = sadd.s32 %s46, 1
      %p50 = scmp.eq.s32.totalorder %s12, 1
      %p51 = scmp.ne.s32.totalorder %s46, %s48
      %p52 = scmp.eq.s32.totalorder %s12, 0
      %p53 = por %p51, %p52
      %p54 = scmp.ne.s32.totalorder %s46, %s48
      %p55 = scmp.eq.s32.totalorder %s17, 1
      %p56 = por %p54, %p55
      %p57 = scmp.ne.s32.totalorder %s48, %s49
      %p58 = scmp.eq.s32.totalorder %s17, 0
      %p59 = por %p57, %p58
      %p60 = scmp.ne.s32.totalorder %s48, %s49
      %p61 = scmp.eq.s32.totalorder %s18, 1
      %p62 = por %p60, %p61
      %p64 = scmp.ne.s32.totalorder %s49, %s63
      %p65 = scmp.eq.s32.totalorder %s18, 0
      %p66 = por %p64, %p65
      %s68 = sadd.s32 %s67, 1
      %p71 = scmp.eq.s32.totalorder %s12, 1
      %p72 = scmp.ne.s32.totalorder %s67, %s69
      %p73 = scmp.eq.s32.totalorder %s12, 0
      %p74 = por %p72, %p73
      %p75 = scmp.ne.s32.totalorder %s67, %s69
      %p76 = scmp.eq.s32.totalorder %s17, 1
      %p77 = por %p75, %p76
      %p78 = scmp.ne.s32.totalorder %s69, %s70
      %p79 = scmp.eq.s32.totalorder %s17, 0
      %p80 = por %p78, %p79
      %p81 = scmp.ne.s32.totalorder %s69, %s70
      %p82 = scmp.eq.s32.totalorder %s18, 1
      %p83 = por %p81, %p82
      %p85 = scmp.ne.s32.totalorder %s70, %s84
      %p86 = scmp.eq.s32.totalorder %s18, 0
      %p87 = por %p85, %p86
      %s88 = ssub.s32 %s12, %s19
      %p89 = scmp.eq.s32.totalorder %s88, 0
      %s91 = sadd.s32 %s90, 1
      %s92 = scalar_select %p89, %s90, %s91
      %p95 = pneg %p89
      %p96 = scmp.eq.s32.totalorder %s12, 1
      %p97 = por %p95, %p96
      %p98 = scmp.ne.s32.totalorder %s90, %s93
      %p99 = scmp.eq.s32.totalorder %s12, 0
      %p100 = por %p98, %p99
      %p101 = scmp.ne.s32.totalorder %s90, %s93
      %p102 = scmp.eq.s32.totalorder %s17, 1
      %p103 = por %p101, %p102
      %p104 = scmp.ne.s32.totalorder %s93, %s94
      %p105 = scmp.eq.s32.totalorder %s17, 0
      %p106 = por %p104, %p105
      %p107 = scmp.ne.s32.totalorder %s93, %s94
      %p108 = scmp.eq.s32.totalorder %s18, 1
      %p109 = por %p107, %p108
      %p111 = scmp.ne.s32.totalorder %s94, %s110
      %p112 = scmp.eq.s32.totalorder %s18, 0
      %p113 = por %p111, %p112
      %p114 = scmp.le.s32.totalorder 1, %s12
      %p115 = scmp.lt.s32.totalorder %s12, 3
      %p116 = pnand %p114, %p115
      %p117 = pneg %p116
      // Predicated region
      $region9: #{tpu_custom_call.1} parent=5 // pred_check
        _
      $region10: #{tpu_custom_call.1} parent=5 // pred_check_branch
        %119 = sbr.rel (%p116) target = $region12
      $region11: #{tpu_custom_call.1} parent=5 // pred_region
        %s120 = ssub.s32 %s12, 1
        // Predicated region
        $region13: #{tpu_custom_call.1} parent=11 // pred_check
          %p121 = pneg %p59
        $region14: #{tpu_custom_call.1} parent=11 // pred_check_branch
          %123 = sbr.rel (%p121) target = $region16
        $region15: #{tpu_custom_call.1} parent=11 // pred_region
          _
        $region16: #{tpu_custom_call.1} parent=11 // pred_fallthru
          _
        // Predicated region
        $region17: #{tpu_custom_call.1} parent=11 // pred_check
          %p124 = pneg %p80
        $region18: #{tpu_custom_call.1} parent=11 // pred_check_branch
          %126 = sbr.rel (%p124) target = $region20
        $region19: #{tpu_custom_call.1} parent=11 // pred_region
          _
        $region20: #{tpu_custom_call.1} parent=11 // pred_fallthru
          _
      $region12: #{tpu_custom_call.1} parent=5 // pred_fallthru
        _
      %p127 = scmp.lt.s32.totalorder %s12, 2
      // Predicated region
      $region21: #{tpu_custom_call.1} parent=5 // pred_check
        %p128 = pneg %p127
      $region22: #{tpu_custom_call.1} parent=5 // pred_check_branch
        %130 = sbr.rel (%p128) target = $region24
      $region23: #{tpu_custom_call.1} parent=5 // pred_region
        // Predicated region
        $region25: #{tpu_custom_call.1} parent=23 // pred_check
          %p131 = pneg %p32
        $region26: #{tpu_custom_call.1} parent=23 // pred_check_branch
          %133 = sbr.rel (%p131) target = $region28
        $region27: #{tpu_custom_call.1} parent=23 // pred_region
          %p134 = scmp.lt.s32.totalorder %s12, 1
          %s135 = scalar_select %p134, %s12, 1
          %s136 = smul.addr %s135, 10
          %s137 = smul.addr %s136, 8
          %s138 = scalar_lea.vmem %s0, %s137
        $region28: #{tpu_custom_call.1} parent=23 // pred_fallthru
          _
      $region24: #{tpu_custom_call.1} parent=5 // pred_fallthru
        _
      %p139 = scmp.le.s32.totalorder 1, %s12
      %p140 = scmp.lt.s32.totalorder %s12, 3
      %p141 = pnand %p139, %p140
      %p142 = pneg %p141
      // Predicated region
      $region29: #{tpu_custom_call.1} parent=5 // pred_check
        _
      $region30: #{tpu_custom_call.1} parent=5 // pred_check_branch
        %144 = sbr.rel (%p141) target = $region32
      $region31: #{tpu_custom_call.1} parent=5 // pred_region
        %s145 = ssub.s32 %s12, 1
        %p146 = scmp.lt.s32.totalorder %s17, 1
        %s147 = scalar_select %p146, %s17, 1
        %s148 = smul.addr %s147, 10
        %s149 = smul.addr %s148, 8
        %s150 = scalar_lea.vmem %s0, %s149
        %p151 = pneg %p38
        %p152 = pneg %p35
        %p153 = pneg %p59
        %p154 = pneg %p56
        %p155 = pneg %p80
        %p156 = pneg %p77
        %p157 = pneg %p106
        %p158 = pneg %p103
        %s159 = sand.u32 %s93, 1
        %s160 = scalar_lea.sflag [#allocation3], %s159
        %s161 = sand.u32 %s93, 1
        %s162 = smul.addr %s161, 16
        %s163 = scalar_lea.vmem [#allocation2], %s162
        %p164 = scmp.lt.s32.totalorder %s17, 1
        %s165 = scalar_select %p164, %s17, 1
        %s166 = smul.addr %s165, 10
        %s167 = smul.addr %s166, 8
        %s168 = scalar_lea.vmem %s0, %s167
        %v169 = vld [vmem:[%s1] sm:$0xff]
        %v170 = vld [vmem:[%s168] sm:$0xff]
        %v171 = vld [vmem:[%s168 + $0x8] sm:$0xff]
        %v172 = vld [vmem:[%s168 + $0x10] sm:$0xff]
        %v173 = vld [vmem:[%s168 + $0x18] sm:$0xff]
        %v174 = vld [vmem:[%s168 + $0x20] sm:$0xff]
        %v175 = vld [vmem:[%s168 + $0x28] sm:$0xff]
        %v176 = vld [vmem:[%s168 + $0x30] sm:$0xff]
        %v177 = vld [vmem:[%s168 + $0x38] sm:$0xff]
        %v178 = vld [vmem:[%s168 + $0x40] sm:$0xf]
        %v179 = vld [vmem:[%s168 + $0x48] sm:$0xf]
        %v180 = vld [vmem:[%s2] sm:$0xff]
        %182 = vset.pattern.permute.xlu0 0
        %183 = vperm.xlu0 %182, %v180
        %v184 = vpop.permute.xlu0 %183
        %vm186 = vcmask 293888
        %v188 = vsel %vm186, %v169, 0
        %vm190 = vcmask 1043456
        %v192 = vsel %vm190, %v178, 0
        %v195 = vsel %vm190, %v179, 0
        %197 = vmatpush.msra.mxu0 0.0
        %198 = vmatpush.msra.mxu0 0.0
        %199 = vmatpush.msra.mxu0 0.0
        %200 = vmatpush.msra.mxu0 0.0
        %201 = vmatpush.msra.mxu0 0.0
        %202 = vmatpush.msra.mxu0 0.0
        %203 = vmatpush.msra.mxu0 0.0
        %204 = vmatpush.msra.mxu0 0.0
        %205 = vmatpush.msra.mxu0 0.0
        %206 = vmatpush.msra.mxu0 0.0
        %207 = vmatpush.msra.mxu0 0.0
        %208 = vmatpush.msra.mxu0 %v192
        %209 = vmatpush.msra.mxu0 %v176
        %210 = vmatpush.msra.mxu0 %v174
        %211 = vmatpush.msra.mxu0 %v172
        %212 = vmatpush.msra.mxu0 %v170
        %213 = vmatmul.f32.gmra.mxu0 %v188
        %v214 = vpop.f32.mrf.mxu0
        %v215 = vadd.f32 %v184, %v214
        %216 = vdwg.mxu0
        %217 = vmatpush.msra.mxu0 0.0
        %218 = vmatpush.msra.mxu0 0.0
        %219 = vmatpush.msra.mxu0 0.0
        %220 = vmatpush.msra.mxu0 0.0
        %221 = vmatpush.msra.mxu0 0.0
        %222 = vmatpush.msra.mxu0 0.0
        %223 = vmatpush.msra.mxu0 0.0
        %224 = vmatpush.msra.mxu0 0.0
        %225 = vmatpush.msra.mxu0 0.0
        %226 = vmatpush.msra.mxu0 0.0
        %227 = vmatpush.msra.mxu0 0.0
        %228 = vmatpush.msra.mxu0 %v195
        %229 = vmatpush.msra.mxu0 %v177
        %230 = vmatpush.msra.mxu0 %v175
        %231 = vmatpush.msra.mxu0 %v173
        %232 = vmatpush.msra.mxu0 %v171
        %233 = vmatmul.f32.gmra.mxu0 %v188
        %v234 = vpop.f32.mrf.mxu0
        %v235 = vadd.f32 %v184, %v234
        %236 = vdwg.mxu0
        %vm237 = vcmp.ge.f32.partialorder %v215, 0.0
        %vm238 = vcmp.ge.f32.partialorder %v235, 0.0
        %v239 = vmul.f32 %v215, 0.01
        %v240 = vmul.f32 %v235, 0.01
        %v241 = vsel %vm237, %v215, %v239
        %v242 = vsel %vm238, %v235, %v240
        %243 = vst [vmem:[%s163] sm:$0xff] %v241
        %244 = vst [vmem:[%s163 + $0x8] sm:$0xff] %v242
        %s245 = sand.u32 %s93, 1
        %s246 = scalar_lea.sflag [#allocation3], %s245
        %s247 = sand.u32 %s93, 1
        %s248 = smul.addr %s247, 16
        %s249 = scalar_lea.vmem [#allocation2], %s248
        // Predicated region
        $region33: #{tpu_custom_call.1} parent=31 // pred_check
          %p250 = pneg %p103
        $region34: #{tpu_custom_call.1} parent=31 // pred_check_branch
          %252 = sbr.rel (%p250) target = $region36
        $region35: #{tpu_custom_call.1} parent=31 // pred_region
          %254 = vsyncadd %s246, 0
          %s255 = smul.addr %s17, 2
          %s256 = smul.addr %s255, 8
          %s257 = scalar_lea.hbm %s3, %s256
          %s259 = sshll.u32 %s249, 4
          %s260 = int_to_ptr.vmem [resolvable:$true] %s259
          %s261 = sshll.u32 %s257, 4
          %s262 = int_to_ptr.hbm [resolvable:$true] %s261
          %264 = dma.vmem_to_hbm [thread:$0]  %s260, 256, %s262, %s246
        $region36: #{tpu_custom_call.1} parent=31 // pred_fallthru
          _
      $region32: #{tpu_custom_call.1} parent=5 // pred_fallthru
        _
      %p265 = scmp.le.s32.totalorder 2, %s12
      // Predicated region
      $region37: #{tpu_custom_call.1} parent=5 // pred_check
        %p266 = pneg %p265
      $region38: #{tpu_custom_call.1} parent=5 // pred_check_branch
        %268 = sbr.rel (%p266) target = $region40
      $region39: #{tpu_custom_call.1} parent=5 // pred_region
        %s269 = ssub.s32 %s12, 2
        // Predicated region
        $region41: #{tpu_custom_call.1} parent=39 // pred_check
          %p270 = pneg %p109
        $region42: #{tpu_custom_call.1} parent=39 // pred_check_branch
          %272 = sbr.rel (%p270) target = $region44
        $region43: #{tpu_custom_call.1} parent=39 // pred_region
          %s273 = sand.u32 %s94, 1
          %s274 = scalar_lea.sflag [#allocation3], %s273
          %s275 = sand.u32 %s94, 1
          %s276 = smul.addr %s275, 16
          %s277 = scalar_lea.vmem [#allocation2], %s276
          %279 = dma.done %s274, 256
        $region44: #{tpu_custom_call.1} parent=39 // pred_fallthru
          _
      $region40: #{tpu_custom_call.1} parent=5 // pred_fallthru
        _
    $region6: #{tpu_custom_call.1} parent=1 // loop_footer
      %s16 = sadd.s32 1, %s12
    $region7: #{tpu_custom_call.1} parent=1 // loop_footer_branch
      %11 = sbr.rel target = $region3
    $region8: #{tpu_custom_call.1} parent=1 // loop_exit
      _
    %280 = vsyncpa [#allocation3], 1
    %s281 = scalar_lea.sflag [#allocation3], 1
    %282 = vsyncpa %s281, 1

</llo_original>
